<compile_context>
chip_gen: v7x
topology: tpu7x:2x2x1
jax: 0.10.0
libtpu: 0.0.40
codegen_flags: <defaults>
</compile_context>

<pallas_src>
import jax
import jax.numpy as jnp
from jax.experimental import pallas as pl
from jax.experimental.pallas import tpu as pltpu


def _clip_kernel(x_ref, o_ref):
    # Elementwise clamp on the whole VMEM tile (pure VPU work).
    x = x_ref[...]
    zero = jnp.zeros((), dtype=x.dtype)
    one = jnp.ones((), dtype=x.dtype)
    o_ref[...] = jnp.minimum(jnp.maximum(x, zero), one)


def _sublane_min(dtype):
    # Minimum second-to-last block dim per packed dtype.
    return {4: 8, 2: 16, 1: 32}.get(jnp.dtype(dtype).itemsize, 8)


def _tile_and_vmem_budget():
    """Generation-aware (tile_bytes, vmem_limit_bytes)."""
    tile_bytes = 4 * 1024 * 1024        # v5e / v6e sweet spot
    vmem_limit = 24 * 1024 * 1024       # 4x tile (double-buffered in+out) + headroom
    try:
        info = pltpu.get_tpu_info()
        vmem_cap = getattr(info, "vmem_capacity_bytes", None)
        if vmem_cap is not None and vmem_cap <= 80 * 1024 * 1024:
            # v7x-class chip (64 MiB VMEM/TC, ~3.2 TB/s HBM): bigger tiles to
            # shrink the relative per-grid-step overhead.
            tile_bytes = 8 * 1024 * 1024
            vmem_limit = 40 * 1024 * 1024
    except Exception:
        pass
    return tile_bytes, vmem_limit


def _run_2d(x2d, tr, width, vmem_limit_bytes):
    rows, _ = x2d.shape
    return pl.pallas_call(
        _clip_kernel,
        out_shape=jax.ShapeDtypeStruct((rows, width), x2d.dtype),
        grid_spec=pltpu.PrefetchScalarGridSpec(
            num_scalar_prefetch=0,
            grid=(pl.cdiv(rows, tr),),
            in_specs=[pl.BlockSpec((tr, width), lambda i: (i, 0))],
            out_specs=pl.BlockSpec((tr, width), lambda i: (i, 0)),
        ),
        # TODO(synk): switch to pltpu.CORE_PARALLEL on v7x once dual-TC
        # sharding is verified in a trace; plain "parallel" is the safe default.
        compiler_params=pltpu.CompilerParams(
            dimension_semantics=("parallel",),
            vmem_limit_bytes=vmem_limit_bytes,
        ),
    )(x2d)


def clipped_linear_activation(x, *, force_pallas=False,
                              xla_fallback_max_bytes=1 << 20):
    """Equivalent of torch.clamp(x, min=0, max=1) for any shape/dtype."""
    orig_shape = x.shape
    dtype = x.dtype
    n = x.size
    if n == 0:
        return x

    itemsize = jnp.dtype(dtype).itemsize
    sub_min = _sublane_min(dtype)

    # Widest lane-dense slab width that divides the flat size -> free reshape.
    width = None
    for cand in (4096, 2048, 1024, 512, 256, 128):
        if n % cand == 0:
            width = cand
            break

    tiny = (n * itemsize) < xla_fallback_max_bytes
    if width is None or (tiny and not force_pallas):
        # Odd sizes / tiny tensors: a fused XLA clamp is already single-pass
        # (1 read + 1 write), and for a few-KiB tensor the pallas_call launch
        # and DMA-setup overhead dominates, so this is strictly cheaper than
        # padding/slicing around a kernel.
        # TODO(synk): add a masked-tail Pallas path for large non-128-multiple
        # tensors if such shapes ever show up in practice.
        zero = jnp.zeros((), dtype=dtype)
        one = jnp.ones((), dtype=dtype)
        return jnp.minimum(jnp.maximum(x, zero), one)

    rows = n // width
    x2d = jnp.ravel(x).reshape(rows, width)

    tile_bytes, vmem_limit = _tile_and_vmem_budget()
    tr = tile_bytes // (width * itemsize)
    tr = max(sub_min, (tr // sub_min) * sub_min)
    if tr >= rows:
        tr = rows                       # block equals full dim -> always legal
    # else: tr is a multiple of sub_min; cdiv grid masks the partial last block

    out2d = _run_2d(x2d, tr, width, vmem_limit)
    return out2d.reshape(orig_shape)


if __name__ == "__main__":
    key = jax.random.PRNGKey(0)
    k0, k1, k2, k3 = jax.random.split(key, 4)

    # NCHW demo input, same convention as the PyTorch module.
    x = jax.random.normal(k0, (2, 4, 16, 16), dtype=jnp.float32) * 2.0
    y_ref = jnp.minimum(jnp.maximum(x, 0.0), 1.0)
    # Default path for tiny tensors is the fused XLA clamp ...
    y_small = clipped_linear_activation(x)
    # ... and the Pallas kernel itself, forced, on the same input.
    y_pallas = clipped_linear_activation(x, force_pallas=True)
    jax.block_until_ready((y_small, y_pallas))
    assert y_pallas.shape == x.shape and y_pallas.dtype == x.dtype
    assert jnp.array_equal(y_small, y_ref), "mismatch (XLA tiny path, f32)"
    assert jnp.array_equal(y_pallas, y_ref), "mismatch (Pallas path, f32)"

    # Larger tensor takes the default Pallas path (multi-step grid).
    xl = jax.random.normal(k1, (16, 8, 128, 128), dtype=jnp.float32) * 3.0
    yl = clipped_linear_activation(xl)
    jax.block_until_ready(yl)
    assert jnp.array_equal(yl, jnp.minimum(jnp.maximum(xl, 0.0), 1.0)), \
        "mismatch (Pallas path, large f32)"

    # bf16 Pallas path (width=512 slab, full-rows block).
    xb = (jax.random.normal(k2, (4, 33, 128), dtype=jnp.float32) * 3.0).astype(
        jnp.bfloat16
    )
    yb = clipped_linear_activation(xb, force_pallas=True)
    jax.block_until_ready(yb)
    assert yb.dtype == jnp.bfloat16
    assert jnp.allclose(
        yb.astype(jnp.float32), jnp.clip(xb.astype(jnp.float32), 0.0, 1.0)
    ), "mismatch vs reference clamp (bf16)"

    # Non-multiple-of-128 size -> single-pass XLA fallback path.
    xo = jax.random.normal(k3, (7, 13), dtype=jnp.float32) * 2.0
    yo = clipped_linear_activation(xo)
    jax.block_until_ready(yo)
    assert jnp.array_equal(yo, jnp.minimum(jnp.maximum(xo, 0.0), 1.0)), \
        "mismatch (odd-size path)"

    print("KERNEL_OK")
</pallas_src>

<mosaic_0001>
module attributes {stable_mosaic.version = 11 : i64} {
  func.func @_clip_kernel(%arg0: i32, %arg1: memref<1x2048xf32, #tpu.memory_space<vmem>>, %arg2: memref<1x2048xf32, #tpu.memory_space<vmem>>) attributes {dimension_semantics = [#tpu.dimension_semantics<parallel>], iteration_bounds = array<i64: 1>, scalar_prefetch = 0 : i64, scratch_operands = 0 : i64, tpu.core_type = #tpu.core_type<tc>, window_params = [{transform_indices = @transform_0, window_bounds = array<i64: 1, 2048>}, {transform_indices = @transform_1, window_bounds = array<i64: 1, 2048>}]} {
    %c0 = arith.constant 0 : index
    %c0_0 = arith.constant 0 : index
    %0 = vector.load %arg1[%c0, %c0_0] : memref<1x2048xf32, #tpu.memory_space<vmem>>, vector<1x2048xf32>
    %cst = arith.constant 0.000000e+00 : f32
    %1 = vector.broadcast %cst : f32 to vector<1x2048xf32>
    %2 = arith.maximumf %0, %1 : vector<1x2048xf32>
    %cst_1 = arith.constant 1.000000e+00 : f32
    %3 = vector.broadcast %cst_1 : f32 to vector<1x2048xf32>
    %4 = arith.minimumf %2, %3 : vector<1x2048xf32>
    %c0_2 = arith.constant 0 : index
    %c0_3 = arith.constant 0 : index
    %5 = vector.load %arg2[%c0_2, %c0_3] : memref<1x2048xf32, #tpu.memory_space<vmem>>, vector<1x2048xf32>
    tpu.vector_store %arg2[%c0_2, %c0_3], %4 {strides = array<i32>} : memref<1x2048xf32, #tpu.memory_space<vmem>>, vector<1x2048xf32>,
    return
  }
  func.func @transform_0(%arg0: i32) -> (i32, i32) {
    %c0_i32 = arith.constant 0 : i32
    %c0_i32_0 = arith.constant 0 : i32
    return %arg0, %c0_i32 : i32, i32
  }
  func.func @transform_1(%arg0: i32) -> (i32, i32) {
    %c0_i32 = arith.constant 0 : i32
    %c0_i32_0 = arith.constant 0 : i32
    return %arg0, %c0_i32 : i32, i32
  }
}

</mosaic_0001>

<llo_original>
// kernel: tpu_custom_call.1
$region0: #{tpu_custom_call.1}
  #allocation0 [shape = 'u32[]', space=smem, size = 0x4, offset = 0x4, fixed_abs, tag = 'smem constant byte address 0x4 - core index']
  #allocation1 [shape = 'u32[144,128]{1,0:T(1,128)}', space=vmem, size = 0x12000, scoped, tag = 'internal scratch']
  %s0 = inlined_call_operand.hbm [shape: f32[1,2048], index: 0, kind: input, shape index: {}]
  %s1 = inlined_call_operand.hbm [shape: f32[1,2048], index: 1, kind: output, shape index: {}]
  %s2 = sld [smem:[#allocation0]]
  $region18: #{tpu_custom_call.1} parent=0
    _
  %s4 = ssub.s32 1, %s2
  %s5 = scalar_select 0, %s4, %s2
  $region1: #{tpu_custom_call.1} parent=0
    #allocation2 [shape = 'u8[8192]{0}', space=vmem, size = 0x2000, scoped, tag = 'input window, operand 0, single buffered']
    #allocation3 [shape = 's32[1]{0}', space=sflag, size = 0x4, scoped, tag = 'scoped memory for tpu_custom_call.1']
    #allocation4 [shape = 's32[1]{0}', space=sflag, size = 0x4, scoped, tag = 'scoped memory for tpu_custom_call.1']
    #allocation5 [shape = 'u8[8192]{0}', space=vmem, size = 0x2000, scoped, tag = 'output window, operand 0, single buffered']
    %6 = vsyncpa [#allocation3], 0
    %7 = vsyncpa [#allocation4], 0
    // Predicated region
    $region2: #{tpu_custom_call.1} parent=1 // pred_check
      _
    $region3: #{tpu_custom_call.1} parent=1 // pred_check_branch
      %9 = sbr.rel (0) target = $region5
    $region4: #{tpu_custom_call.1} parent=1 // pred_region
      %s11 = ssub.s32 256, 256
      %12 = vsyncadd [#allocation3], %s11
      %s14 = sshll.u32 [#allocation2], 4
      %s15 = int_to_ptr.vmem [resolvable:$true] %s14
      %17 = dma.hbm_to_vmem [thread:$0]  %s0, 256, %s15, [#allocation3]
    $region5: #{tpu_custom_call.1} parent=1 // pred_fallthru
      _
    // Predicated region
    $region6: #{tpu_custom_call.1} parent=1 // pred_check
      _
    $region7: #{tpu_custom_call.1} parent=1 // pred_check_branch
      %19 = sbr.rel (0) target = $region9
    $region8: #{tpu_custom_call.1} parent=1 // pred_region
      %20 = dma.done [#allocation3], 256
    $region9: #{tpu_custom_call.1} parent=1 // pred_fallthru
      _
    %v21 = vld [vmem:[#allocation2] sm:$0xff]
    %v22 = vld [vmem:[#allocation2 + $0x8] sm:$0xff]
    %v23 = vmax.f32 %v21, 0.0
    %v24 = vmax.f32 %v22, 0.0
    %v25 = vmin.f32 %v23, 1.0
    %v26 = vmin.f32 %v24, 1.0
    %27 = vst [vmem:[#allocation5] sm:$0xff] %v25
    %28 = vst [vmem:[#allocation5 + $0x8] sm:$0xff] %v26
    // Predicated region
    $region10: #{tpu_custom_call.1} parent=1 // pred_check
      _
    $region11: #{tpu_custom_call.1} parent=1 // pred_check_branch
      %30 = sbr.rel (0) target = $region13
    $region12: #{tpu_custom_call.1} parent=1 // pred_region
      %s32 = ssub.s32 256, 256
      %33 = vsyncadd [#allocation4], %s32
      %s35 = sshll.u32 [#allocation5], 4
      %s36 = int_to_ptr.vmem [resolvable:$true] %s35
      %38 = dma.vmem_to_hbm [thread:$0]  %s36, 256, %s1, [#allocation4]
    $region13: #{tpu_custom_call.1} parent=1 // pred_fallthru
      _
    // Predicated region
    $region14: #{tpu_custom_call.1} parent=1 // pred_check
      _
    $region15: #{tpu_custom_call.1} parent=1 // pred_check_branch
      %40 = sbr.rel (0) target = $region17
    $region16: #{tpu_custom_call.1} parent=1 // pred_region
      %41 = dma.done [#allocation4], 256
    $region17: #{tpu_custom_call.1} parent=1 // pred_fallthru
      _
    %42 = vsyncpa [#allocation3], 1
    %43 = vsyncpa [#allocation4], 1

</llo_original>
